<compile_context>
chip_gen: v5e
topology: v5e:2x2
jax: 0.10.0
libtpu: 0.0.40
codegen_flags: <defaults>
</compile_context>

<pallas_src>
import functools

import jax
import jax.numpy as jnp
from jax.experimental import pallas as pl
from jax.experimental.pallas import tpu as pltpu


def _ce_partial_kernel(logits_ref, tgt_ref, out_ref, *, hw, tw):
    """Lane-wide partial cross-entropy sums for one (batch, spatial-tile) step.

    logits_ref: (1, C, TW)  — classes on sublanes, positions on lanes.
    tgt_ref:    (1, 1, TW)  int32 target class per position.
    out_ref:    (1, 1, TW)  f32 lane-wide partial sums (resident across the
                spatial-tile axis; summed in the wrapper).
    """
    t = pl.program_id(1)

    @pl.when(t == 0)
    def _():
        out_ref[...] = jnp.zeros_like(out_ref)

    logits = logits_ref[0].astype(jnp.float32)           # (C, TW)
    tgt = tgt_ref[0]                                     # (1, TW) int32

    # Numerically stable logsumexp over the class (sublane) axis.
    m = jnp.max(logits, axis=0, keepdims=True)           # (1, TW)
    lse = m + jnp.log(jnp.sum(jnp.exp(logits - m), axis=0, keepdims=True))

    # Gather the target-class logit via a one-hot compare over the class axis.
    cls = jax.lax.broadcasted_iota(jnp.int32, logits.shape, 0)   # (C, TW)
    picked = jnp.sum(jnp.where(cls == tgt, logits, 0.0),
                     axis=0, keepdims=True)              # (1, TW)

    # Mask ragged tail columns (positions >= hw contribute zero).
    col = jax.lax.broadcasted_iota(jnp.int32, (1, tw), 1) + t * tw
    loss = jnp.where(col < hw, lse - picked, 0.0)        # (1, TW)

    out_ref[...] += loss[None]                           # (1, 1, TW)


@functools.partial(jax.jit, static_argnames=("max_tw",))
def cross_entropy_mean(logits_nchw, indices_nhw, *, max_tw=8192):
    """Equivalent of F.cross_entropy(logits_nchw, indices_nhw) (mean reduction).

    NOTE: like the original module, ignore_index is not supported — every
    position counts toward the mean.
    """
    n, c, h, w = logits_nchw.shape
    hw = h * w
    rows = n * hw

    # Free views: classes on sublanes, spatial positions lane-dense.
    logits3d = logits_nchw.reshape(n, c, hw)
    tgt3d = indices_nhw.reshape(n, 1, hw).astype(jnp.int32)

    # Tile the spatial axis: whole slab if it fits, else 8192-lane chunks
    # (multiple of 128 -> aligned, unmasked vector loads/stores).
    tw = hw if hw <= max_tw else max_tw
    grid_t = pl.cdiv(hw, tw)

    kernel = functools.partial(_ce_partial_kernel, hw=hw, tw=tw)

    in_bytes = (logits_nchw.size * logits_nchw.dtype.itemsize
                + tgt3d.size * 4)
    partials = pl.pallas_call(
        kernel,
        out_shape=jax.ShapeDtypeStruct((n, 1, tw), jnp.float32),
        grid_spec=pltpu.PrefetchScalarGridSpec(
            num_scalar_prefetch=0,
            grid=(n, grid_t),
            in_specs=[
                pl.BlockSpec((1, c, tw), lambda b, t: (b, 0, t)),   # logits tile
                pl.BlockSpec((1, 1, tw), lambda b, t: (b, 0, t)),   # target tile
            ],
            out_specs=pl.BlockSpec((1, 1, tw), lambda b, t: (b, 0, 0)),
        ),
        compiler_params=pltpu.CompilerParams(
            dimension_semantics=("parallel", "arbitrary")),
        cost_estimate=pl.CostEstimate(
            flops=5 * rows * c,
            transcendentals=rows * (c + 1),
            bytes_accessed=in_bytes + n * tw * 4),
    )(logits3d, tgt3d)

    return jnp.sum(partials) / jnp.float32(rows)


class CrossEntropyRateLoss:
    """JAX/Pallas port of lib/losses/compression_losses.py::CrossEntropyRateLoss."""

    def __init__(self, names=("top", "bottom"), weights=None):
        self._names = names
        if weights is None:
            weights = {name: 1.0 for name in names}
        self._weights = weights

    def __call__(self, model_output, gt_image):
        loss_dict = {}
        total_loss = jnp.float32(0.0)
        for name, weight in self._weights.items():
            probs_raw_key = f"y_{name}_probs_raw"
            if probs_raw_key in model_output:
                loss = cross_entropy_mean(
                    model_output[probs_raw_key],
                    model_output[f"y_{name}_indices"],
                )
                total_loss = total_loss + loss * weight
                loss_dict[f"loss_ce_{name}"] = loss
        loss_dict["loss_ce"] = total_loss
        return total_loss, loss_dict


def _reference_ce(logits_nchw, indices_nhw):
    """Pure-JAX reference (matches torch.nn.functional.cross_entropy, mean)."""
    n, c, h, w = logits_nchw.shape
    lg = jnp.transpose(logits_nchw, (0, 2, 3, 1)).reshape(-1, c).astype(jnp.float32)
    tgt = indices_nhw.reshape(-1)
    logp = jax.nn.log_softmax(lg, axis=-1)
    return -jnp.mean(jnp.take_along_axis(logp, tgt[:, None], axis=-1))


if __name__ == "__main__":
    key = jax.random.PRNGKey(0)
    k1, k2, k3, k4, k5 = jax.random.split(key, 5)

    batch, codebook = 2, 8
    # "top" level: 8x8 latent grid; "bottom" level: 16x16 latent grid.
    top_logits = jax.random.normal(k1, (batch, codebook, 8, 8), dtype=jnp.float32)
    top_idx = jax.random.randint(k2, (batch, 8, 8), 0, codebook, dtype=jnp.int32)
    bot_logits = jax.random.normal(k3, (batch, codebook, 16, 16), dtype=jnp.float32)
    bot_idx = jax.random.randint(k4, (batch, 16, 16), 0, codebook, dtype=jnp.int32)
    gt_image = jax.random.normal(k5, (batch, 3, 32, 32), dtype=jnp.float32)  # unused by forward

    model_output = {
        "y_top_probs_raw": top_logits,
        "y_top_indices": top_idx,
        "y_bottom_probs_raw": bot_logits,
        "y_bottom_indices": bot_idx,
    }

    loss_fn = CrossEntropyRateLoss(weights={"top": 1.0, "bottom": 0.5})
    total, loss_dict = loss_fn(model_output, gt_image)
    total = jax.block_until_ready(total)

    # Validate against a pure-JAX reference.
    ref_total = (_reference_ce(top_logits, top_idx) * 1.0
                 + _reference_ce(bot_logits, bot_idx) * 0.5)
    assert jnp.allclose(total, ref_total, rtol=1e-5, atol=1e-5), (total, ref_total)
    assert "loss_ce_top" in loss_dict and "loss_ce_bottom" in loss_dict and "loss_ce" in loss_dict

    print("KERNEL_OK")
</pallas_src>

<mosaic_0001>
module attributes {stable_mosaic.version = 11 : i64} {
  func.func @_ce_partial_kernel(%arg0: i32, %arg1: i32, %arg2: memref<1x8x64xf32, #tpu.memory_space<vmem>>, %arg3: memref<1x1x64xi32, #tpu.memory_space<vmem>>, %arg4: memref<1x1x64xf32, #tpu.memory_space<vmem>>) attributes {dimension_semantics = [#tpu.dimension_semantics<parallel>, #tpu.dimension_semantics<arbitrary>], iteration_bounds = array<i64: 2, 1>, scalar_prefetch = 0 : i64, scratch_operands = 0 : i64, tpu.core_type = #tpu.core_type<tc>, window_params = [{transform_indices = @transform_0, window_bounds = array<i64: 1, 8, 64>}, {transform_indices = @transform_1, window_bounds = array<i64: 1, 1, 64>}, {transform_indices = @transform_2, window_bounds = array<i64: 1, 1, 64>}]} {
    %c0_i32 = arith.constant 0 : i32
    %0 = arith.cmpi eq, %arg1, %c0_i32 : i32
    %1 = arith.extui %0 : i1 to i32
    %c0_i32_0 = arith.constant 0 : i32
    %2 = arith.cmpi ne, %1, %c0_i32_0 : i32
    scf.if %2 {
      %cst_17 = arith.constant 0.000000e+00 : f32
      %36 = vector.broadcast %cst_17 : f32 to vector<1x1x64xf32>
      %c0_18 = arith.constant 0 : index
      %c0_19 = arith.constant 0 : index
      %c0_20 = arith.constant 0 : index
      %37 = vector.load %arg4[%c0_18, %c0_19, %c0_20] : memref<1x1x64xf32, #tpu.memory_space<vmem>>, vector<1x1x64xf32>
      tpu.vector_store %arg4[%c0_18, %c0_19, %c0_20], %36 {strides = array<i32>} : memref<1x1x64xf32, #tpu.memory_space<vmem>>, vector<1x1x64xf32>,
    } else {
    }
    %c0 = arith.constant 0 : index
    %c0_1 = arith.constant 0 : index
    %c0_2 = arith.constant 0 : index
    %3 = vector.load %arg2[%c0, %c0_1, %c0_2] : memref<1x8x64xf32, #tpu.memory_space<vmem>>, vector<1x8x64xf32>
    %4 = vector.shape_cast %3 : vector<1x8x64xf32> to vector<8x64xf32>
    %c0_3 = arith.constant 0 : index
    %c0_4 = arith.constant 0 : index
    %c0_5 = arith.constant 0 : index
    %5 = vector.load %arg3[%c0_3, %c0_4, %c0_5] : memref<1x1x64xi32, #tpu.memory_space<vmem>>, vector<1x1x64xi32>
    %6 = vector.shape_cast %5 : vector<1x1x64xi32> to vector<1x64xi32>
    %cst = arith.constant dense<0xFF800000> : vector<64xf32>
    %7 = vector.multi_reduction <maximumf>, %4, %cst [0] : vector<8x64xf32> to vector<64xf32>
    %8 = vector.shape_cast %7 : vector<64xf32> to vector<1x64xf32>
    %9 = vector.broadcast %8 : vector<1x64xf32> to vector<8x64xf32>
    %10 = arith.subf %4, %9 : vector<8x64xf32>
    %11 = math.exp %10 : vector<8x64xf32>
    %cst_6 = arith.constant dense<0.000000e+00> : vector<64xf32>
    %12 = vector.multi_reduction <add>, %11, %cst_6 [0] : vector<8x64xf32> to vector<64xf32>
    %13 = vector.shape_cast %12 : vector<64xf32> to vector<1x64xf32>
    %14 = math.log %13 : vector<1x64xf32>
    %15 = arith.addf %8, %14 : vector<1x64xf32>
    %16 = tpu.iota {dimensions = array<i32: 0>} : vector<8x64xi32>
    %17 = vector.broadcast %6 : vector<1x64xi32> to vector<8x64xi32>
    %18 = arith.cmpi eq, %16, %17 : vector<8x64xi32>
    %cst_7 = arith.constant 0.000000e+00 : f32
    %19 = vector.broadcast %cst_7 : f32 to vector<8x64xf32>
    %20 = arith.select %18, %4, %19 : vector<8x64xi1>, vector<8x64xf32>
    %cst_8 = arith.constant dense<0.000000e+00> : vector<64xf32>
    %21 = vector.multi_reduction <add>, %20, %cst_8 [0] : vector<8x64xf32> to vector<64xf32>
    %22 = vector.shape_cast %21 : vector<64xf32> to vector<1x64xf32>
    %23 = tpu.iota {dimensions = array<i32: 1>} : vector<1x64xi32>
    %c64_i32 = arith.constant 64 : i32
    %24 = arith.muli %arg1, %c64_i32 : i32
    %25 = vector.broadcast %24 : i32 to vector<1x64xi32>
    %26 = arith.addi %23, %25 : vector<1x64xi32>
    %c64_i32_9 = arith.constant 64 : i32
    %27 = vector.broadcast %c64_i32_9 : i32 to vector<1x64xi32>
    %28 = arith.cmpi slt, %26, %27 : vector<1x64xi32>
    %29 = arith.subf %15, %22 : vector<1x64xf32>
    %cst_10 = arith.constant 0.000000e+00 : f32
    %30 = vector.broadcast %cst_10 : f32 to vector<1x64xf32>
    %31 = arith.select %28, %29, %30 : vector<1x64xi1>, vector<1x64xf32>
    %c0_11 = arith.constant 0 : index
    %c0_12 = arith.constant 0 : index
    %c0_13 = arith.constant 0 : index
    %32 = vector.load %arg4[%c0_11, %c0_12, %c0_13] : memref<1x1x64xf32, #tpu.memory_space<vmem>>, vector<1x1x64xf32>
    %33 = vector.shape_cast %31 : vector<1x64xf32> to vector<1x1x64xf32>
    %34 = arith.addf %32, %33 : vector<1x1x64xf32>
    %c0_14 = arith.constant 0 : index
    %c0_15 = arith.constant 0 : index
    %c0_16 = arith.constant 0 : index
    %35 = vector.load %arg4[%c0_14, %c0_15, %c0_16] : memref<1x1x64xf32, #tpu.memory_space<vmem>>, vector<1x1x64xf32>
    tpu.vector_store %arg4[%c0_14, %c0_15, %c0_16], %34 {strides = array<i32>} : memref<1x1x64xf32, #tpu.memory_space<vmem>>, vector<1x1x64xf32>,
    return
  }
  func.func @transform_0(%arg0: i32, %arg1: i32) -> (i32, i32, i32) {
    %c0_i32 = arith.constant 0 : i32
    %c0_i32_0 = arith.constant 0 : i32
    return %arg0, %c0_i32, %arg1 : i32, i32, i32
  }
  func.func @transform_1(%arg0: i32, %arg1: i32) -> (i32, i32, i32) {
    %c0_i32 = arith.constant 0 : i32
    %c0_i32_0 = arith.constant 0 : i32
    return %arg0, %c0_i32, %arg1 : i32, i32, i32
  }
  func.func @transform_2(%arg0: i32, %arg1: i32) -> (i32, i32, i32) {
    %c0_i32 = arith.constant 0 : i32
    %c0_i32_0 = arith.constant 0 : i32
    %c0_i32_1 = arith.constant 0 : i32
    return %arg0, %c0_i32, %c0_i32_0 : i32, i32, i32
  }
}

</mosaic_0001>

<llo_original>
// kernel: cross_entropy_mean.1
$region0: #{cross_entropy_mean.1}
  #allocation0 [shape = 'u32[]', space=smem, size = 0x4, offset = 0x4, fixed_abs, tag = 'smem constant byte address 0x4 - core index']
  #allocation1 [shape = 'u32[72,128]{1,0:T(1,128)}', space=vmem, size = 0x9000, scoped, tag = 'internal scratch']
  %s0 = inlined_call_operand.vmem [shape: f32[2,8,64], index: 0, kind: input, shape index: {}]
  %s1 = inlined_call_operand.vmem [shape: s32[2,1,64], index: 1, kind: input, shape index: {}]
  %s2 = inlined_call_operand.vmem [shape: f32[2,1,64], index: 2, kind: output, shape index: {}]
  %s3 = sld [smem:[#allocation0]]
  $region45: #{cross_entropy_mean.1} parent=0
    _
  %s5 = ssub.s32 1, %s3
  %s6 = scalar_select 0, %s5, %s3
  loop: start=0, step=1, limit=4
  $region2: #{cross_entropy_mean.1} parent=0 // loop_pre_header
    _
  $region3: #{cross_entropy_mean.1} parent=0 // loop_header
    %s8 = sphi 0, %s12
    %p9 = scmp.ge.s32.totalorder %s8, 4
    %s15 = sphi 0, %s27
    %s16 = sphi 0, %s23
    %s17 = sphi 0, %s15
    %s18 = sphi 0, %s16
    %s19 = sphi 0, %s17
    %s20 = sphi 0, %s18
    %s32 = sphi 0, %s34
    %s35 = sphi 0, %s32
    %s36 = sphi 0, %s35
    %s52 = sphi 0, %s36
    %s60 = sphi 0, %s62
    %s63 = sphi 0, %s60
    %s64 = sphi 0, %s63
    %s80 = sphi 0, %s64
    %s86 = sphi 0, %s88
    %s89 = sphi 0, %s86
    %s90 = sphi 0, %s89
    %s106 = sphi 0, %s90
  $region4: #{cross_entropy_mean.1} parent=0 // loop_header_branch
    %11 = sbr.rel (%p9) target = $region8
  $region5: #{cross_entropy_mean.1} parent=0 // loop_body
    %s13 = ssub.s32 %s8, 1
    %s14 = ssub.s32 %s8, 2
    %s21 = sadd.s32 1, %s16
    %p22 = scmp.ge.s32.totalorder %s21, 1
    %s23 = scalar_select %p22, 0, %s21
    %s24 = sadd.s32 1, %s15
    %s25 = scalar_select %p22, %s24, %s15
    %p26 = scmp.ge.s32.totalorder %s25, 2
    %s27 = scalar_select %p26, 0, %s25
    %s28 = ssub.s32 %s15, %s27
    %s29 = ssub.s32 %s16, %s23
    %s30 = sor.u32 %s28, %s29
    %p31 = scmp.eq.s32.totalorder %s30, 0
    %s33 = sadd.s32 %s32, 1
    %s34 = scalar_select %p31, %s32, %s33
    %p37 = pneg %p31
    %p38 = scmp.eq.s32.totalorder %s8, 1
    %p39 = por %p37, %p38
    %p40 = scmp.ne.s32.totalorder %s32, %s35
    %p41 = scmp.eq.s32.totalorder %s8, 0
    %p42 = por %p40, %p41
    %p43 = scmp.ne.s32.totalorder %s32, %s35
    %p44 = scmp.eq.s32.totalorder %s13, 1
    %p45 = por %p43, %p44
    %p46 = scmp.ne.s32.totalorder %s35, %s36
    %p47 = scmp.eq.s32.totalorder %s13, 0
    %p48 = por %p46, %p47
    %p49 = scmp.ne.s32.totalorder %s35, %s36
    %p50 = scmp.eq.s32.totalorder %s14, 1
    %p51 = por %p49, %p50
    %p53 = scmp.ne.s32.totalorder %s36, %s52
    %p54 = scmp.eq.s32.totalorder %s14, 0
    %p55 = por %p53, %p54
    %s56 = ssub.s32 %s15, %s27
    %s57 = ssub.s32 %s16, %s23
    %s58 = sor.u32 %s56, %s57
    %p59 = scmp.eq.s32.totalorder %s58, 0
    %s61 = sadd.s32 %s60, 1
    %s62 = scalar_select %p59, %s60, %s61
    %p65 = pneg %p59
    %p66 = scmp.eq.s32.totalorder %s8, 1
    %p67 = por %p65, %p66
    %p68 = scmp.ne.s32.totalorder %s60, %s63
    %p69 = scmp.eq.s32.totalorder %s8, 0
    %p70 = por %p68, %p69
    %p71 = scmp.ne.s32.totalorder %s60, %s63
    %p72 = scmp.eq.s32.totalorder %s13, 1
    %p73 = por %p71, %p72
    %p74 = scmp.ne.s32.totalorder %s63, %s64
    %p75 = scmp.eq.s32.totalorder %s13, 0
    %p76 = por %p74, %p75
    %p77 = scmp.ne.s32.totalorder %s63, %s64
    %p78 = scmp.eq.s32.totalorder %s14, 1
    %p79 = por %p77, %p78
    %p81 = scmp.ne.s32.totalorder %s64, %s80
    %p82 = scmp.eq.s32.totalorder %s14, 0
    %p83 = por %p81, %p82
    %s84 = ssub.s32 %s15, %s27
    %p85 = scmp.eq.s32.totalorder %s84, 0
    %s87 = sadd.s32 %s86, 1
    %s88 = scalar_select %p85, %s86, %s87
    %p91 = pneg %p85
    %p92 = scmp.eq.s32.totalorder %s8, 1
    %p93 = por %p91, %p92
    %p94 = scmp.ne.s32.totalorder %s86, %s89
    %p95 = scmp.eq.s32.totalorder %s8, 0
    %p96 = por %p94, %p95
    %p97 = scmp.ne.s32.totalorder %s86, %s89
    %p98 = scmp.eq.s32.totalorder %s13, 1
    %p99 = por %p97, %p98
    %p100 = scmp.ne.s32.totalorder %s89, %s90
    %p101 = scmp.eq.s32.totalorder %s13, 0
    %p102 = por %p100, %p101
    %p103 = scmp.ne.s32.totalorder %s89, %s90
    %p104 = scmp.eq.s32.totalorder %s14, 1
    %p105 = por %p103, %p104
    %p107 = scmp.ne.s32.totalorder %s90, %s106
    %p108 = scmp.eq.s32.totalorder %s14, 0
    %p109 = por %p107, %p108
    %p110 = scmp.le.s32.totalorder 1, %s8
    %p111 = scmp.lt.s32.totalorder %s8, 3
    %p112 = pnand %p110, %p111
    %p113 = pneg %p112
    // Predicated region
    $region9: #{cross_entropy_mean.1} parent=5 // pred_check
      _
    $region10: #{cross_entropy_mean.1} parent=5 // pred_check_branch
      %115 = sbr.rel (%p112) target = $region12
    $region11: #{cross_entropy_mean.1} parent=5 // pred_region
      %s116 = ssub.s32 %s8, 1
    $region12: #{cross_entropy_mean.1} parent=5 // pred_fallthru
      _
    %p117 = scmp.lt.s32.totalorder %s8, 2
    // Predicated region
    $region13: #{cross_entropy_mean.1} parent=5 // pred_check
      %p118 = pneg %p117
    $region14: #{cross_entropy_mean.1} parent=5 // pred_check_branch
      %120 = sbr.rel (%p118) target = $region16
    $region15: #{cross_entropy_mean.1} parent=5 // pred_region
      // Predicated region
      $region17: #{cross_entropy_mean.1} parent=15 // pred_check
        %p121 = pneg %p42
      $region18: #{cross_entropy_mean.1} parent=15 // pred_check_branch
        %123 = sbr.rel (%p121) target = $region20
      $region19: #{cross_entropy_mean.1} parent=15 // pred_region
        %p124 = scmp.lt.s32.totalorder %s15, 1
        %s125 = scalar_select %p124, %s15, 1
        %p126 = scmp.lt.s32.totalorder %s16, 0
        %s127 = scalar_select %p126, %s16, 0
        %s128 = sadd.s32 %s127, %s125
        %s129 = smul.addr %s128, 8
        %s130 = scalar_lea.vmem %s0, %s129
      $region20: #{cross_entropy_mean.1} parent=15 // pred_fallthru
        _
      // Predicated region
      $region21: #{cross_entropy_mean.1} parent=15 // pred_check
        %p131 = pneg %p70
      $region22: #{cross_entropy_mean.1} parent=15 // pred_check_branch
        %133 = sbr.rel (%p131) target = $region24
      $region23: #{cross_entropy_mean.1} parent=15 // pred_region
        %p134 = scmp.lt.s32.totalorder %s15, 1
        %s135 = scalar_select %p134, %s15, 1
        %p136 = scmp.lt.s32.totalorder %s16, 0
        %s137 = scalar_select %p136, %s16, 0
        %s138 = sadd.s32 %s137, %s135
        %s139 = scalar_lea.vmem %s1, %s138
      $region24: #{cross_entropy_mean.1} parent=15 // pred_fallthru
        _
    $region16: #{cross_entropy_mean.1} parent=5 // pred_fallthru
      _
    %p140 = scmp.le.s32.totalorder 1, %s8
    %p141 = scmp.lt.s32.totalorder %s8, 3
    %p142 = pnand %p140, %p141
    %p143 = pneg %p142
    // Predicated region
    $region25: #{cross_entropy_mean.1} parent=5 // pred_check
      _
    $region26: #{cross_entropy_mean.1} parent=5 // pred_check_branch
      %145 = sbr.rel (%p142) target = $region28
    $region27: #{cross_entropy_mean.1} parent=5 // pred_region
      %s146 = ssub.s32 %s8, 1
      %p147 = scmp.lt.s32.totalorder %s17, 1
      %s148 = scalar_select %p147, %s17, 1
      %p149 = scmp.lt.s32.totalorder %s18, 0
      %s150 = scalar_select %p149, %s18, 0
      %s151 = sadd.s32 %s150, %s148
      %s152 = smul.addr %s151, 8
      %s153 = scalar_lea.vmem %s0, %s152
      %p154 = pneg %p48
      %p155 = pneg %p45
      %p156 = scmp.lt.s32.totalorder %s17, 1
      %s157 = scalar_select %p156, %s17, 1
      %p158 = scmp.lt.s32.totalorder %s18, 0
      %s159 = scalar_select %p158, %s18, 0
      %s160 = sadd.s32 %s159, %s157
      %s161 = scalar_lea.vmem %s1, %s160
      %p162 = pneg %p76
      %p163 = pneg %p73
      %p164 = pneg %p102
      %p165 = pneg %p99
      %p166 = scmp.lt.s32.totalorder %s17, 1
      %s167 = scalar_select %p166, %s17, 1
      %s168 = scalar_lea.vmem %s2, %s167
      %p169 = scmp.lt.s32.totalorder %s17, 1
      %s170 = scalar_select %p169, %s17, 1
      %p171 = scmp.lt.s32.totalorder %s18, 0
      %s172 = scalar_select %p171, %s18, 0
      %s173 = sadd.s32 %s172, %s170
      %s174 = smul.addr %s173, 8
      %s175 = scalar_lea.vmem %s0, %s174
      %p176 = scmp.lt.s32.totalorder %s17, 1
      %s177 = scalar_select %p176, %s17, 1
      %p178 = scmp.lt.s32.totalorder %s18, 0
      %s179 = scalar_select %p178, %s18, 0
      %s180 = sadd.s32 %s179, %s177
      %s181 = scalar_lea.vmem %s1, %s180
      %p182 = scmp.lt.s32.totalorder %s17, 1
      %s183 = scalar_select %p182, %s17, 1
      %s184 = scalar_lea.vmem %s2, %s183
      %p185 = scmp.eq.s32.totalorder %s18, 0
      // Predicated region
      $region29: #{cross_entropy_mean.1} parent=27 // pred_check
        %p186 = pneg %p185
      $region30: #{cross_entropy_mean.1} parent=27 // pred_check_branch
        %188 = sbr.rel (%p186) target = $region32
      $region31: #{cross_entropy_mean.1} parent=27 // pred_region
        %vm189 = vcmask 516096
        %190 = vst.msk [vmem:[%s184] sm:$0x1] %vm189, 0.0
      $region32: #{cross_entropy_mean.1} parent=27 // pred_fallthru
        _
      %v191 = vld [vmem:[%s175] sm:$0xff]
      %v192 = vld [vmem:[%s181] sm:$0x1]
      %vm193 = vcmask 523264
      %v194 = vsel %vm193, %v191, -inf
      %v195 = vrot.slane %v194, 4
      %v196 = vmax.f32 %v194, %v195
      %v197 = vrot.slane %v196, 2
      %v198 = vmax.f32 %v196, %v197
      %v199 = vrot.slane %v198, 1
      %v200 = vmax.f32 %v198, %v199
      %v201 = vsub.f32 %v191, %v200
      %v202 = vmul.f32 %v201, 1.442695
      %v203 = vpow.pop %v202
      %v204 = vsel %vm193, %v203, 0.0
      %v205 = vrot.slane %v204, 4
      %v206 = vadd.f32 %v204, %v205
      %v207 = vrot.slane %v206, 2
      %v208 = vadd.f32 %v206, %v207
      %v209 = vrot.slane %v208, 1
      %v210 = vadd.f32 %v208, %v209
      %v211 = vlog2.pop %v210
      %v212 = vmul.f32 %v211, 0.6931472
      %v213 = vadd.f32 %v200, %v212
      %v214 = vlaneseq
      %v215 = vshrl.u32 %v214, 7
      %v216 = vperm.slane %v192, 0
      %vm217 = vcmp.eq.s32.totalorder %v215, %v216
      %v218 = vsel %vm217, %v191, 0.0
      %v219 = vsel %vm193, %v218, 0.0
      %v220 = vrot.slane %v219, 4
      %v221 = vadd.f32 %v219, %v220
      %v222 = vrot.slane %v221, 2
      %v223 = vadd.f32 %v221, %v222
      %v224 = vrot.slane %v223, 1
      %v225 = vadd.f32 %v223, %v224
      %v226 = vlaneseq
      %v227 = vand.u32 %v226, 127
      %s228 = smul.u32 %s18, 64
      %v229 = vstv %s228
      %v230 = vadd.s32 %v227, %v229
      %vm231 = vcmp.lt.s32.totalorder %v230, 64
      %v232 = vsub.f32 %v213, %v225
      %v233 = vsel %vm231, %v232, 0.0
      %v234 = vld [vmem:[%s184] sm:$0x1]
      %v235 = vadd.f32 %v234, %v233
      %vm236 = vcmask 516096
      %237 = vst.msk [vmem:[%s184] sm:$0x1] %vm236, %v235
      %p238 = scmp.lt.s32.totalorder %s17, 1
      %s239 = scalar_select %p238, %s17, 1
      %s240 = scalar_lea.vmem %s2, %s239
      // Predicated region
      $region33: #{cross_entropy_mean.1} parent=27 // pred_check
        %p241 = pneg %p99
      $region34: #{cross_entropy_mean.1} parent=27 // pred_check_branch
        %243 = sbr.rel (%p241) target = $region36
      $region35: #{cross_entropy_mean.1} parent=27 // pred_region
        _
      $region36: #{cross_entropy_mean.1} parent=27 // pred_fallthru
        _
    $region28: #{cross_entropy_mean.1} parent=5 // pred_fallthru
      _
    %p244 = scmp.le.s32.totalorder 2, %s8
    // Predicated region
    $region37: #{cross_entropy_mean.1} parent=5 // pred_check
      %p245 = pneg %p244
    $region38: #{cross_entropy_mean.1} parent=5 // pred_check_branch
      %247 = sbr.rel (%p245) target = $region40
    $region39: #{cross_entropy_mean.1} parent=5 // pred_region
      %s248 = ssub.s32 %s8, 2
      // Predicated region
      $region41: #{cross_entropy_mean.1} parent=39 // pred_check
        %p249 = pneg %p105
      $region42: #{cross_entropy_mean.1} parent=39 // pred_check_branch
        %251 = sbr.rel (%p249) target = $region44
      $region43: #{cross_entropy_mean.1} parent=39 // pred_region
        %p252 = scmp.lt.s32.totalorder %s19, 1
        %s253 = scalar_select %p252, %s19, 1
        %s254 = scalar_lea.vmem %s2, %s253
      $region44: #{cross_entropy_mean.1} parent=39 // pred_fallthru
        _
    $region40: #{cross_entropy_mean.1} parent=5 // pred_fallthru
      _
  $region6: #{cross_entropy_mean.1} parent=0 // loop_footer
    %s12 = sadd.s32 1, %s8
  $region7: #{cross_entropy_mean.1} parent=0 // loop_footer_branch
    %7 = sbr.rel target = $region3
  $region8: #{cross_entropy_mean.1} parent=0 // loop_exit
    _

</llo_original>
